<compile_context>
chip_gen: v7x
topology: tpu7x:2x2x1
jax: 0.10.0
libtpu: 0.0.40
codegen_flags: <defaults>
</compile_context>

<pallas_src>
import functools

import jax
import jax.numpy as jnp
from jax.experimental import pallas as pl
from jax.experimental.pallas import tpu as pltpu


def _round_up(n, m):
    return ((n + m - 1) // m) * m


def _lstm_model_kernel(hp, x_ref, w1_ref, b1_ref, w2_ref, b2_ref, wo_ref, bo_ref, out_ref):
    """hp = per-gate padded width (multiple of 128). Gate layout along lanes: [i | g | o]."""

    def cell(inp, w_ref, b_ref):
        # (TM, K) @ (K, 3*hp) + (1, 3*hp); slices below are lane-tile aligned (multiples of 128).
        gates = jnp.dot(inp, w_ref[...], preferred_element_type=jnp.float32) + b_ref[...]
        i_g = jax.nn.sigmoid(gates[:, 0 * hp:1 * hp])
        g_g = jnp.tanh(gates[:, 1 * hp:2 * hp])
        o_g = jax.nn.sigmoid(gates[:, 2 * hp:3 * hp])
        # c_prev == 0 and the forget gate was dropped at param-prep time.
        c = i_g * g_g
        return o_g * jnp.tanh(c)          # padded lanes: 0.5 * tanh(0.5 * 0) == 0 exactly

    h1 = cell(x_ref[...], w1_ref, b1_ref)
    h2 = cell(h1, w2_ref, b2_ref)

    logits = jnp.dot(h2, wo_ref[...], preferred_element_type=jnp.float32) + bo_ref[...]
    out_ref[...] = jax.nn.sigmoid(logits)   # lane-dense (TM, 128*k) store


def prepare_params(params):
    """One-time host-side prep: fold embedding into layer-1 gates, drop the forget gate,
    transpose to (in, out), fuse biases, and pad each gate / the output to 128 lanes."""
    H, d_in = params["we"].shape
    output_dim = params["wo"].shape[0]
    hp = _round_up(H, 128)
    outp = _round_up(output_dim, 128)

    we_t = params["we"].T          # (d_in, H)
    be = params["be"]              # (H,)

    def pad_gate(w, b, rows, rows_pad):
        wp = jnp.zeros((rows_pad, hp), jnp.float32).at[:rows, :H].set(w)
        bp = jnp.zeros((hp,), jnp.float32).at[:H].set(b)
        return wp, bp

    gate_ids = (0, 2, 3)   # [i, g, o]; forget gate (1) is dead for seq_len=1, h0=c0=0

    # Layer 1: fold feature_embedding into the gate matmul.
    w1_cols, b1_cols = [], []
    for g in gate_ids:
        w = params["w_ih_l0"][g * H:(g + 1) * H, :]                     # (H_out, H_in)
        b = params["b_ih_l0"][g * H:(g + 1) * H] + params["b_hh_l0"][g * H:(g + 1) * H]
        w_fold = we_t @ w.T                                             # (d_in, H)
        b_fold = be @ w.T + b                                           # (H,)
        wp, bp = pad_gate(w_fold, b_fold, d_in, d_in)
        w1_cols.append(wp)
        b1_cols.append(bp)

    # Layer 2: plain gate weights, transposed to (in, out).
    w2_cols, b2_cols = [], []
    for g in gate_ids:
        w = params["w_ih_l1"][g * H:(g + 1) * H, :].T                   # (H_in, H_out)
        b = params["b_ih_l1"][g * H:(g + 1) * H] + params["b_hh_l1"][g * H:(g + 1) * H]
        wp, bp = pad_gate(w, b, H, hp)
        w2_cols.append(wp)
        b2_cols.append(bp)

    wo = jnp.zeros((hp, outp), jnp.float32).at[:H, :output_dim].set(params["wo"].T)
    bo = jnp.zeros((1, outp), jnp.float32).at[0, :output_dim].set(params["bo"])

    return {
        "w1": jnp.concatenate(w1_cols, axis=1),                         # (d_in, 3*hp)
        "b1": jnp.concatenate(b1_cols).reshape(1, -1),                  # (1, 3*hp)
        "w2": jnp.concatenate(w2_cols, axis=1),                         # (hp, 3*hp)
        "b2": jnp.concatenate(b2_cols).reshape(1, -1),                  # (1, 3*hp)
        "wo": wo,                                                       # (hp, outp)
        "bo": bo,                                                       # (1, outp)
    }


@functools.partial(jax.jit, static_argnames=("output_dim",))
def lstm_model_forward(x, prep, *, output_dim):
    """x: (batch, input_dim) f32 -> (batch,) if output_dim == 1 else (batch, output_dim)."""
    batch, d_in = x.shape
    hp, outp = prep["wo"].shape
    three_hp = prep["w1"].shape[1]

    tm = min(_round_up(max(batch, 1), 8), 512)      # f32-friendly row tile, up to 512 rows
    b_pad = _round_up(batch, tm)
    if b_pad != batch:
        x = jnp.pad(x, ((0, b_pad - batch), (0, 0)))
    grid = (pl.cdiv(b_pad, tm),)

    kernel = functools.partial(_lstm_model_kernel, hp)
    out = pl.pallas_call(
        kernel,
        out_shape=jax.ShapeDtypeStruct((b_pad, outp), jnp.float32),
        grid=grid,
        in_specs=[
            pl.BlockSpec((tm, d_in), lambda i: (i, 0)),         # x: tiled over batch
            pl.BlockSpec((d_in, three_hp), lambda i: (0, 0)),   # layer-1 gate weights (resident)
            pl.BlockSpec((1, three_hp), lambda i: (0, 0)),
            pl.BlockSpec((hp, three_hp), lambda i: (0, 0)),     # layer-2 gate weights (resident)
            pl.BlockSpec((1, three_hp), lambda i: (0, 0)),
            pl.BlockSpec((hp, outp), lambda i: (0, 0)),         # fc_out (padded, lane-dense)
            pl.BlockSpec((1, outp), lambda i: (0, 0)),
        ],
        out_specs=pl.BlockSpec((tm, outp), lambda i: (i, 0)),
        compiler_params=pltpu.CompilerParams(
            dimension_semantics=("parallel",)),
    )(x, prep["w1"], prep["b1"], prep["w2"], prep["b2"], prep["wo"], prep["bo"])

    return jnp.squeeze(out[:batch, :output_dim])


def reference_forward(x, params):
    """Pure-JAX reference mirroring the PyTorch forward (eval mode, seq_len=1, zero state)."""
    emb = x @ params["we"].T + params["be"]
    H = params["we"].shape[0]

    def cell(inp, w_ih, b_ih, b_hh):
        gates = inp @ w_ih.T + b_ih + b_hh
        i = jax.nn.sigmoid(gates[:, 0 * H:1 * H])
        f = jax.nn.sigmoid(gates[:, 1 * H:2 * H])
        g = jnp.tanh(gates[:, 2 * H:3 * H])
        o = jax.nn.sigmoid(gates[:, 3 * H:4 * H])
        c = f * 0.0 + i * g                     # c_prev == 0
        return o * jnp.tanh(c)

    h1 = cell(emb, params["w_ih_l0"], params["b_ih_l0"], params["b_hh_l0"])
    h2 = cell(h1, params["w_ih_l1"], params["b_ih_l1"], params["b_hh_l1"])
    out = jax.nn.sigmoid(h2 @ params["wo"].T + params["bo"])
    return jnp.squeeze(out)


def init_params(key, input_dim, hidden_dim, output_dim):
    ks = jax.random.split(key, 10)
    scale = 0.1
    return {
        "we": scale * jax.random.normal(ks[0], (hidden_dim, input_dim), jnp.float32),
        "be": scale * jax.random.normal(ks[1], (hidden_dim,), jnp.float32),
        "w_ih_l0": scale * jax.random.normal(ks[2], (4 * hidden_dim, hidden_dim), jnp.float32),
        "b_ih_l0": scale * jax.random.normal(ks[3], (4 * hidden_dim,), jnp.float32),
        "b_hh_l0": scale * jax.random.normal(ks[4], (4 * hidden_dim,), jnp.float32),
        "w_ih_l1": scale * jax.random.normal(ks[5], (4 * hidden_dim, hidden_dim), jnp.float32),
        "b_ih_l1": scale * jax.random.normal(ks[6], (4 * hidden_dim,), jnp.float32),
        "b_hh_l1": scale * jax.random.normal(ks[7], (4 * hidden_dim,), jnp.float32),
        "wo": scale * jax.random.normal(ks[8], (output_dim, hidden_dim), jnp.float32),
        "bo": scale * jax.random.normal(ks[9], (output_dim,), jnp.float32),
        # w_hh_l{0,1} omitted: with seq_len == 1 and h0 == 0 they contribute nothing beyond
        # their bias terms (b_hh), which ARE included above.
    }


if __name__ == "__main__":
    batch, input_dim, hidden_dim, output_dim = 8, 16, 32, 1

    key = jax.random.PRNGKey(0)
    k_x, k_p = jax.random.split(key)
    x = jax.random.normal(k_x, (batch, input_dim), jnp.float32)
    params = init_params(k_p, input_dim, hidden_dim, output_dim)

    prep = prepare_params(params)                       # one-time, cached outside the hot path
    out = lstm_model_forward(x, prep, output_dim=output_dim)
    out = jax.block_until_ready(out)

    ref = reference_forward(x, params)
    assert out.shape == (batch,), out.shape
    assert jnp.allclose(out, ref, atol=1e-5, rtol=1e-5), (out, ref)

    print("KERNEL_OK")
</pallas_src>

<mosaic_0001>
module attributes {stable_mosaic.version = 11 : i64} {
  func.func @_lstm_model_kernel(%arg0: i32, %arg1: memref<8x16xf32, #tpu.memory_space<vmem>>, %arg2: memref<16x384xf32, #tpu.memory_space<vmem>>, %arg3: memref<1x384xf32, #tpu.memory_space<vmem>>, %arg4: memref<128x384xf32, #tpu.memory_space<vmem>>, %arg5: memref<1x384xf32, #tpu.memory_space<vmem>>, %arg6: memref<128x128xf32, #tpu.memory_space<vmem>>, %arg7: memref<1x128xf32, #tpu.memory_space<vmem>>, %arg8: memref<8x128xf32, #tpu.memory_space<vmem>>) attributes {dimension_semantics = [#tpu.dimension_semantics<parallel>], iteration_bounds = array<i64: 1>, scalar_prefetch = 0 : i64, scratch_operands = 0 : i64, tpu.core_type = #tpu.core_type<tc>, window_params = [{transform_indices = @transform_0, window_bounds = array<i64: 8, 16>}, {pipeline_mode = #tpu.pipeline_mode<synchronous>, transform_indices = @transform_1, window_bounds = array<i64: 16, 384>}, {pipeline_mode = #tpu.pipeline_mode<synchronous>, transform_indices = @transform_2, window_bounds = array<i64: 1, 384>}, {pipeline_mode = #tpu.pipeline_mode<synchronous>, transform_indices = @transform_3, window_bounds = array<i64: 128, 384>}, {pipeline_mode = #tpu.pipeline_mode<synchronous>, transform_indices = @transform_4, window_bounds = array<i64: 1, 384>}, {pipeline_mode = #tpu.pipeline_mode<synchronous>, transform_indices = @transform_5, window_bounds = array<i64: 128, 128>}, {pipeline_mode = #tpu.pipeline_mode<synchronous>, transform_indices = @transform_6, window_bounds = array<i64: 1, 128>}, {transform_indices = @transform_7, window_bounds = array<i64: 8, 128>}]} {
    %c0 = arith.constant 0 : index
    %c0_0 = arith.constant 0 : index
    %0 = vector.load %arg1[%c0, %c0_0] : memref<8x16xf32, #tpu.memory_space<vmem>>, vector<8x16xf32>
    %c0_1 = arith.constant 0 : index
    %c0_2 = arith.constant 0 : index
    %1 = vector.load %arg2[%c0_1, %c0_2] : memref<16x384xf32, #tpu.memory_space<vmem>>, vector<16x384xf32>
    %cst = arith.constant dense<0.000000e+00> : vector<8x384xf32>
    %2 = tpu.matmul %0, %1, %cst {dimension_numbers = #tpu.dot_dimension_numbers<[1], [0], [0], [1], [0, 0, 1, 1], [], []>} : vector<8x16xf32>, vector<16x384xf32>, vector<8x384xf32> -> vector<8x384xf32>
    %c0_3 = arith.constant 0 : index
    %c0_4 = arith.constant 0 : index
    %3 = vector.load %arg3[%c0_3, %c0_4] : memref<1x384xf32, #tpu.memory_space<vmem>>, vector<1x384xf32>
    %4 = vector.broadcast %3 : vector<1x384xf32> to vector<8x384xf32>
    %5 = arith.addf %2, %4 : vector<8x384xf32>
    %6 = vector.extract_strided_slice %5 {offsets = [0, 0], sizes = [8, 128], strides = [1, 1]} : vector<8x384xf32> to vector<8x128xf32>
    %7 = arith.negf %6 : vector<8x128xf32>
    %8 = math.exp %7 : vector<8x128xf32>
    %cst_5 = arith.constant 1.000000e+00 : f32
    %9 = vector.broadcast %cst_5 : f32 to vector<8x128xf32>
    %10 = arith.addf %9, %8 : vector<8x128xf32>
    %11 = arith.divf %9, %10 : vector<8x128xf32>
    %12 = vector.extract_strided_slice %5 {offsets = [0, 128], sizes = [8, 128], strides = [1, 1]} : vector<8x384xf32> to vector<8x128xf32>
    %13 = math.tanh %12 : vector<8x128xf32>
    %14 = vector.extract_strided_slice %5 {offsets = [0, 256], sizes = [8, 128], strides = [1, 1]} : vector<8x384xf32> to vector<8x128xf32>
    %15 = arith.negf %14 : vector<8x128xf32>
    %16 = math.exp %15 : vector<8x128xf32>
    %cst_6 = arith.constant 1.000000e+00 : f32
    %17 = vector.broadcast %cst_6 : f32 to vector<8x128xf32>
    %18 = arith.addf %17, %16 : vector<8x128xf32>
    %19 = arith.divf %17, %18 : vector<8x128xf32>
    %20 = arith.mulf %11, %13 : vector<8x128xf32>
    %21 = math.tanh %20 : vector<8x128xf32>
    %22 = arith.mulf %19, %21 : vector<8x128xf32>
    %c0_7 = arith.constant 0 : index
    %c0_8 = arith.constant 0 : index
    %23 = vector.load %arg4[%c0_7, %c0_8] : memref<128x384xf32, #tpu.memory_space<vmem>>, vector<128x384xf32>
    %cst_9 = arith.constant dense<0.000000e+00> : vector<8x384xf32>
    %24 = tpu.matmul %22, %23, %cst_9 {dimension_numbers = #tpu.dot_dimension_numbers<[1], [0], [0], [1], [0, 0, 1, 1], [], []>} : vector<8x128xf32>, vector<128x384xf32>, vector<8x384xf32> -> vector<8x384xf32>
    %c0_10 = arith.constant 0 : index
    %c0_11 = arith.constant 0 : index
    %25 = vector.load %arg5[%c0_10, %c0_11] : memref<1x384xf32, #tpu.memory_space<vmem>>, vector<1x384xf32>
    %26 = vector.broadcast %25 : vector<1x384xf32> to vector<8x384xf32>
    %27 = arith.addf %24, %26 : vector<8x384xf32>
    %28 = vector.extract_strided_slice %27 {offsets = [0, 0], sizes = [8, 128], strides = [1, 1]} : vector<8x384xf32> to vector<8x128xf32>
    %29 = arith.negf %28 : vector<8x128xf32>
    %30 = math.exp %29 : vector<8x128xf32>
    %cst_12 = arith.constant 1.000000e+00 : f32
    %31 = vector.broadcast %cst_12 : f32 to vector<8x128xf32>
    %32 = arith.addf %31, %30 : vector<8x128xf32>
    %33 = arith.divf %31, %32 : vector<8x128xf32>
    %34 = vector.extract_strided_slice %27 {offsets = [0, 128], sizes = [8, 128], strides = [1, 1]} : vector<8x384xf32> to vector<8x128xf32>
    %35 = math.tanh %34 : vector<8x128xf32>
    %36 = vector.extract_strided_slice %27 {offsets = [0, 256], sizes = [8, 128], strides = [1, 1]} : vector<8x384xf32> to vector<8x128xf32>
    %37 = arith.negf %36 : vector<8x128xf32>
    %38 = math.exp %37 : vector<8x128xf32>
    %cst_13 = arith.constant 1.000000e+00 : f32
    %39 = vector.broadcast %cst_13 : f32 to vector<8x128xf32>
    %40 = arith.addf %39, %38 : vector<8x128xf32>
    %41 = arith.divf %39, %40 : vector<8x128xf32>
    %42 = arith.mulf %33, %35 : vector<8x128xf32>
    %43 = math.tanh %42 : vector<8x128xf32>
    %44 = arith.mulf %41, %43 : vector<8x128xf32>
    %c0_14 = arith.constant 0 : index
    %c0_15 = arith.constant 0 : index
    %45 = vector.load %arg6[%c0_14, %c0_15] : memref<128x128xf32, #tpu.memory_space<vmem>>, vector<128x128xf32>
    %cst_16 = arith.constant dense<0.000000e+00> : vector<8x128xf32>
    %46 = tpu.matmul %44, %45, %cst_16 {dimension_numbers = #tpu.dot_dimension_numbers<[1], [0], [0], [1], [0, 0, 1, 1], [], []>} : vector<8x128xf32>, vector<128x128xf32>, vector<8x128xf32> -> vector<8x128xf32>
    %c0_17 = arith.constant 0 : index
    %c0_18 = arith.constant 0 : index
    %47 = vector.load %arg7[%c0_17, %c0_18] : memref<1x128xf32, #tpu.memory_space<vmem>>, vector<1x128xf32>
    %48 = vector.broadcast %47 : vector<1x128xf32> to vector<8x128xf32>
    %49 = arith.addf %46, %48 : vector<8x128xf32>
    %50 = arith.negf %49 : vector<8x128xf32>
    %51 = math.exp %50 : vector<8x128xf32>
    %cst_19 = arith.constant 1.000000e+00 : f32
    %52 = vector.broadcast %cst_19 : f32 to vector<8x128xf32>
    %53 = arith.addf %52, %51 : vector<8x128xf32>
    %54 = arith.divf %52, %53 : vector<8x128xf32>
    %c0_20 = arith.constant 0 : index
    %c0_21 = arith.constant 0 : index
    %55 = vector.load %arg8[%c0_20, %c0_21] : memref<8x128xf32, #tpu.memory_space<vmem>>, vector<8x128xf32>
    tpu.vector_store %arg8[%c0_20, %c0_21], %54 {strides = array<i32>} : memref<8x128xf32, #tpu.memory_space<vmem>>, vector<8x128xf32>,
    return
  }
  func.func @transform_0(%arg0: i32) -> (i32, i32) {
    %c0_i32 = arith.constant 0 : i32
    %c0_i32_0 = arith.constant 0 : i32
    return %arg0, %c0_i32 : i32, i32
  }
  func.func @transform_1(%arg0: i32) -> (i32, i32) {
    %c0_i32 = arith.constant 0 : i32
    %c0_i32_0 = arith.constant 0 : i32
    %c0_i32_1 = arith.constant 0 : i32
    return %c0_i32, %c0_i32_0 : i32, i32
  }
  func.func @transform_2(%arg0: i32) -> (i32, i32) {
    %c0_i32 = arith.constant 0 : i32
    %c0_i32_0 = arith.constant 0 : i32
    %c0_i32_1 = arith.constant 0 : i32
    return %c0_i32, %c0_i32_0 : i32, i32
  }
  func.func @transform_3(%arg0: i32) -> (i32, i32) {
    %c0_i32 = arith.constant 0 : i32
    %c0_i32_0 = arith.constant 0 : i32
    %c0_i32_1 = arith.constant 0 : i32
    return %c0_i32, %c0_i32_0 : i32, i32
  }
  func.func @transform_4(%arg0: i32) -> (i32, i32) {
    %c0_i32 = arith.constant 0 : i32
    %c0_i32_0 = arith.constant 0 : i32
    %c0_i32_1 = arith.constant 0 : i32
    return %c0_i32, %c0_i32_0 : i32, i32
  }
  func.func @transform_5(%arg0: i32) -> (i32, i32) {
    %c0_i32 = arith.constant 0 : i32
    %c0_i32_0 = arith.constant 0 : i32
    %c0_i32_1 = arith.constant 0 : i32
    return %c0_i32, %c0_i32_0 : i32, i32
  }
  func.func @transform_6(%arg0: i32) -> (i32, i32) {
    %c0_i32 = arith.constant 0 : i32
    %c0_i32_0 = arith.constant 0 : i32
    %c0_i32_1 = arith.constant 0 : i32
    return %c0_i32, %c0_i32_0 : i32, i32
  }
  func.func @transform_7(%arg0: i32) -> (i32, i32) {
    %c0_i32 = arith.constant 0 : i32
    %c0_i32_0 = arith.constant 0 : i32
    return %arg0, %c0_i32 : i32, i32
  }
}

</mosaic_0001>

<llo_original>
// kernel: lstm_model_forward.1
$region0: #{lstm_model_forward.1}
  #allocation0 [shape = 'u32[]', space=smem, size = 0x4, offset = 0x4, fixed_abs, tag = 'smem constant byte address 0x4 - core index']
  #allocation1 [shape = 'u32[144,128]{1,0:T(1,128)}', space=vmem, size = 0x12000, scoped, tag = 'internal scratch']
  %s0 = inlined_call_operand.hbm [shape: f32[8,16], index: 0, kind: input, shape index: {}]
  %s1 = inlined_call_operand.hbm [shape: f32[16,384], index: 1, kind: input, shape index: {}]
  %s2 = inlined_call_operand.vmem [shape: f32[1,384], index: 2, kind: input, shape index: {}]
  %s3 = inlined_call_operand.hbm [shape: f32[128,384], index: 3, kind: input, shape index: {}]
  %s4 = inlined_call_operand.vmem [shape: f32[1,384], index: 4, kind: input, shape index: {}]
  %s5 = inlined_call_operand.hbm [shape: f32[128,128], index: 5, kind: input, shape index: {}]
  %s6 = inlined_call_operand.vmem [shape: f32[1,128], index: 6, kind: input, shape index: {}]
  %s7 = inlined_call_operand.vmem [shape: f32[8,128], index: 7, kind: output, shape index: {}]
  %s8 = sld [smem:[#allocation0]]
  $region54: #{lstm_model_forward.1} parent=0
    _
  %s10 = ssub.s32 1, %s8
  %s11 = scalar_select 0, %s10, %s8
  $region1: #{lstm_model_forward.1} parent=0
    #allocation2 [shape = 'u8[4096]{0}', space=vmem, size = 0x1000, scoped, tag = 'input window, operand 0, single buffered']
    #allocation3 [shape = 's32[1]{0}', space=sflag, size = 0x4, scoped, tag = 'scoped memory for lstm_model_forward.1']
    #allocation4 [shape = 'u8[24576]{0}', space=vmem, size = 0x6000, scoped, tag = 'input window, operand 1, single buffered']
    #allocation5 [shape = 's32[1]{0}', space=sflag, size = 0x4, scoped, tag = 'scoped memory for lstm_model_forward.1']
    #allocation6 [shape = 'u8[196608]{0}', space=vmem, size = 0x30000, scoped, tag = 'input window, operand 3, single buffered']
    #allocation7 [shape = 'u8[65536]{0}', space=vmem, size = 0x10000, scoped, tag = 'input window, operand 5, single buffered']
    #allocation8 [shape = 's32[1]{0}', space=sflag, size = 0x4, scoped, tag = 'scoped memory for lstm_model_forward.1']
    %12 = vsyncpa [#allocation3], 0
    %13 = vsyncpa [#allocation5], 0
    %14 = vsyncpa [#allocation8], 0
    // Predicated region
    $region2: #{lstm_model_forward.1} parent=1 // pred_check
      _
    $region3: #{lstm_model_forward.1} parent=1 // pred_check_branch
      %16 = sbr.rel (0) target = $region5
    $region4: #{lstm_model_forward.1} parent=1 // pred_region
      %s18 = ssub.s32 128, 128
      %19 = vsyncadd [#allocation3], %s18
      %s21 = sshll.u32 [#allocation2], 4
      %s22 = int_to_ptr.vmem [resolvable:$true] %s21
      %24 = dma.hbm_to_vmem [thread:$0]  %s0, 128, %s22, [#allocation3]
    $region5: #{lstm_model_forward.1} parent=1 // pred_fallthru
      _
    // Predicated region
    $region6: #{lstm_model_forward.1} parent=1 // pred_check
      _
    $region7: #{lstm_model_forward.1} parent=1 // pred_check_branch
      %26 = sbr.rel (0) target = $region9
    $region8: #{lstm_model_forward.1} parent=1 // pred_region
      %s28 = ssub.s32 768, 768
      %29 = vsyncadd [#allocation5], %s28
      %s30 = sshll.u32 [#allocation4], 4
      %s31 = int_to_ptr.vmem [resolvable:$true] %s30
      %36 = dma.hbm_to_vmem [thread:$0]  %s1, 768, %s31, [#allocation5], 384, 384, 24
    $region9: #{lstm_model_forward.1} parent=1 // pred_fallthru
      _
    // Predicated region
    $region10: #{lstm_model_forward.1} parent=1 // pred_check
      _
    $region11: #{lstm_model_forward.1} parent=1 // pred_check_branch
      %38 = sbr.rel (0) target = $region13
    $region12: #{lstm_model_forward.1} parent=1 // pred_region
      _
    $region13: #{lstm_model_forward.1} parent=1 // pred_fallthru
      _
    // Predicated region
    $region14: #{lstm_model_forward.1} parent=1 // pred_check
      _
    $region15: #{lstm_model_forward.1} parent=1 // pred_check_branch
      %40 = sbr.rel (0) target = $region17
    $region16: #{lstm_model_forward.1} parent=1 // pred_region
      %s42 = ssub.s32 6144, 6144
      %43 = vsyncadd [#allocation5], %s42
      %s44 = sshll.u32 [#allocation6], 4
      %s45 = int_to_ptr.vmem [resolvable:$true] %s44
      %50 = dma.hbm_to_vmem [thread:$0]  %s3, 6144, %s45, [#allocation5], 384, 384, 24
    $region17: #{lstm_model_forward.1} parent=1 // pred_fallthru
      _
    // Predicated region
    $region18: #{lstm_model_forward.1} parent=1 // pred_check
      _
    $region19: #{lstm_model_forward.1} parent=1 // pred_check_branch
      %52 = sbr.rel (0) target = $region21
    $region20: #{lstm_model_forward.1} parent=1 // pred_region
      _
    $region21: #{lstm_model_forward.1} parent=1 // pred_fallthru
      _
    // Predicated region
    $region22: #{lstm_model_forward.1} parent=1 // pred_check
      _
    $region23: #{lstm_model_forward.1} parent=1 // pred_check_branch
      %54 = sbr.rel (0) target = $region25
    $region24: #{lstm_model_forward.1} parent=1 // pred_region
      %s56 = ssub.s32 2048, 2048
      %57 = vsyncadd [#allocation8], %s56
      %s58 = sshll.u32 [#allocation7], 4
      %s59 = int_to_ptr.vmem [resolvable:$true] %s58
      %64 = dma.hbm_to_vmem [thread:$0]  %s5, 2048, %s59, [#allocation8], 128, 128, 8
    $region25: #{lstm_model_forward.1} parent=1 // pred_fallthru
      _
    // Predicated region
    $region26: #{lstm_model_forward.1} parent=1 // pred_check
      _
    $region27: #{lstm_model_forward.1} parent=1 // pred_check_branch
      %66 = sbr.rel (0) target = $region29
    $region28: #{lstm_model_forward.1} parent=1 // pred_region
      _
    $region29: #{lstm_model_forward.1} parent=1 // pred_fallthru
      _
    // Predicated region
    $region30: #{lstm_model_forward.1} parent=1 // pred_check
      _
    $region31: #{lstm_model_forward.1} parent=1 // pred_check_branch
      %68 = sbr.rel (0) target = $region33
    $region32: #{lstm_model_forward.1} parent=1 // pred_region
      %69 = dma.done [#allocation3], 128
    $region33: #{lstm_model_forward.1} parent=1 // pred_fallthru
      _
    // Predicated region
    $region34: #{lstm_model_forward.1} parent=1 // pred_check
      _
    $region35: #{lstm_model_forward.1} parent=1 // pred_check_branch
      %71 = sbr.rel (0) target = $region37
    $region36: #{lstm_model_forward.1} parent=1 // pred_region
      %72 = dma.done [#allocation5], 768
    $region37: #{lstm_model_forward.1} parent=1 // pred_fallthru
      _
    // Predicated region
    $region38: #{lstm_model_forward.1} parent=1 // pred_check
      _
    $region39: #{lstm_model_forward.1} parent=1 // pred_check_branch
      %74 = sbr.rel (0) target = $region41
    $region40: #{lstm_model_forward.1} parent=1 // pred_region
      %75 = dma.done [#allocation5], 6144
    $region41: #{lstm_model_forward.1} parent=1 // pred_fallthru
      _
    // Predicated region
    $region42: #{lstm_model_forward.1} parent=1 // pred_check
      _
    $region43: #{lstm_model_forward.1} parent=1 // pred_check_branch
      %77 = sbr.rel (0) target = $region45
    $region44: #{lstm_model_forward.1} parent=1 // pred_region
      %78 = dma.done [#allocation8], 2048
    $region45: #{lstm_model_forward.1} parent=1 // pred_fallthru
      _
    %v79 = vld [vmem:[#allocation2] sm:$0xff]
    %v80 = vld [vmem:[#allocation4] sm:$0xff]
    %v81 = vld [vmem:[#allocation4 + $0x8] sm:$0xff]
    %v82 = vld [vmem:[#allocation4 + $0x10] sm:$0xff]
    %v83 = vld [vmem:[#allocation4 + $0x18] sm:$0xff]
    %v84 = vld [vmem:[#allocation4 + $0x20] sm:$0xff]
    %v85 = vld [vmem:[#allocation4 + $0x28] sm:$0xff]
    %v86 = vld [vmem:[%s2] sm:$0x7]
    %v88 = vlaneseq
    %v89 = vshrl.u32 %v88, 7
    %v90 = vsub.s32 0, %v89
    %v91 = vrot.slane %v86, %v90
    %v92 = vlaneseq
    %v93 = vshrl.u32 %v92, 7
    %v94 = vsub.s32 1, %v93
    %v95 = vrot.slane %v86, %v94
    %v96 = vlaneseq
    %v97 = vshrl.u32 %v96, 7
    %v98 = vsub.s32 2, %v97
    %v99 = vrot.slane %v86, %v98
    %vm103 = vcmask 130048
    %v105 = vsel %vm103, %v79, 0
    %107 = vmatprep.subr.mxu0 %v81
    %108 = vmatpush1.msra.mxu0 %v80
    %109 = vmatprep.subr.mxu0 %v84
    %110 = vmatpush1.msra.mxu0 %v83
    %111 = vmatprep.subr.mxu0 0.0
    %112 = vmatpush1.msra.mxu0 0.0
    %113 = vmatprep.subr.mxu0 0.0
    %114 = vmatpush1.msra.mxu0 0.0
    %115 = vmatprep.subr.mxu0 0.0
    %116 = vmatpush1.msra.mxu0 0.0
    %117 = vmatprep.subr.mxu0 0.0
    %118 = vmatpush1.msra.mxu0 0.0
    %119 = vmatprep.subr.mxu0 0.0
    %120 = vmatpush1.msra.mxu0 0.0
    %121 = vmatprep.subr.mxu0 0.0
    %122 = vmatpush1.msra.mxu0 0.0
    %123 = vmatprep.subr.mxu0 0.0
    %124 = vmatpush1.msra.mxu0 0.0
    %125 = vmatprep.subr.mxu0 0.0
    %126 = vmatpush1.msra.mxu0 0.0
    %127 = vmatprep.subr.mxu0 0.0
    %128 = vmatpush1.msra.mxu0 0.0
    %129 = vmatprep.subr.mxu0 0.0
    %130 = vmatpush1.msra.mxu0 0.0
    %131 = vmatprep.subr.mxu0 0.0
    %132 = vmatpush1.msra.mxu0 0.0
    %133 = vmatprep.subr.mxu0 0.0
    %134 = vmatpush1.msra.mxu0 0.0
    %135 = vmatprep.subr.mxu0 0.0
    %136 = vmatpush1.msra.mxu0 0.0
    %137 = vmatprep.subr.mxu0 0.0
    %138 = vmatpush1.msra.mxu0 0.0
    %139 = vmatprep.subr.mxu0 0.0
    %140 = vmatpush1.msra.mxu0 0.0
    %141 = vmatprep.subr.mxu0 0.0
    %142 = vmatpush1.msra.mxu0 0.0
    %143 = vmatprep.subr.mxu0 0.0
    %144 = vmatpush1.msra.mxu0 0.0
    %145 = vmatprep.subr.mxu0 0.0
    %146 = vmatpush1.msra.mxu0 0.0
    %147 = vmatprep.subr.mxu0 0.0
    %148 = vmatpush1.msra.mxu0 0.0
    %149 = vmatprep.subr.mxu0 0.0
    %150 = vmatpush1.msra.mxu0 0.0
    %151 = vmatprep.subr.mxu0 0.0
    %152 = vmatpush1.msra.mxu0 0.0
    %153 = vmatprep.subr.mxu0 0.0
    %154 = vmatpush1.msra.mxu0 0.0
    %155 = vmatprep.subr.mxu0 0.0
    %156 = vmatpush1.msra.mxu0 0.0
    %157 = vmatprep.subr.mxu0 0.0
    %158 = vmatpush1.msra.mxu0 0.0
    %159 = vmatprep.subr.mxu0 0.0
    %160 = vmatpush1.msra.mxu0 0.0
    %161 = vmatprep.subr.mxu0 0.0
    %162 = vmatpush1.msra.mxu0 0.0
    %163 = vmatprep.subr.mxu0 0.0
    %164 = vmatpush1.msra.mxu0 0.0
    %165 = vmatprep.subr.mxu0 0.0
    %166 = vmatpush1.msra.mxu0 0.0
    %167 = vmatprep.subr.mxu0 0.0
    %168 = vmatpush1.msra.mxu0 0.0
    %169 = vmatprep.subr.mxu0 0.0
    %170 = vmatpush1.msra.mxu0 0.0
    %171 = vmatprep.mubr.f32.mxu0 0.0
    %172 = vmatmul.mubr.f32.gmra.mrb[0].mxu0 %v105
    %v173 = vpop.f32.mrb[0].mxu0
    %v174 = vadd.f32 %v91, %v173
    %v175 = vpop.f32.mrb[0].mxu0
    %v176 = vadd.f32 %v95, %v175
    %177 = vdwg.mxu0
    %178 = vmatprep.subr.mxu0 0.0
    %179 = vmatpush1.msra.mxu0 %v82
    %180 = vmatprep.subr.mxu0 0.0
    %181 = vmatpush1.msra.mxu0 %v85
    %182 = vmatprep.subr.mxu0 0.0
    %183 = vmatpush1.msra.mxu0 0.0
    %184 = vmatprep.subr.mxu0 0.0
    %185 = vmatpush1.msra.mxu0 0.0
    %186 = vmatprep.subr.mxu0 0.0
    %187 = vmatpush1.msra.mxu0 0.0
    %188 = vmatprep.subr.mxu0 0.0
    %189 = vmatpush1.msra.mxu0 0.0
    %190 = vmatprep.subr.mxu0 0.0
    %191 = vmatpush1.msra.mxu0 0.0
    %192 = vmatprep.subr.mxu0 0.0
    %193 = vmatpush1.msra.mxu0 0.0
    %194 = vmatprep.subr.mxu0 0.0
    %195 = vmatpush1.msra.mxu0 0.0
    %196 = vmatprep.subr.mxu0 0.0
    %197 = vmatpush1.msra.mxu0 0.0
    %198 = vmatprep.subr.mxu0 0.0
    %199 = vmatpush1.msra.mxu0 0.0
    %200 = vmatprep.subr.mxu0 0.0
    %201 = vmatpush1.msra.mxu0 0.0
    %202 = vmatprep.subr.mxu0 0.0
    %203 = vmatpush1.msra.mxu0 0.0
    %204 = vmatprep.subr.mxu0 0.0
    %205 = vmatpush1.msra.mxu0 0.0
    %206 = vmatprep.subr.mxu0 0.0
    %207 = vmatpush1.msra.mxu0 0.0
    %208 = vmatprep.subr.mxu0 0.0
    %209 = vmatpush1.msra.mxu0 0.0
    %210 = vmatprep.subr.mxu0 0.0
    %211 = vmatpush1.msra.mxu0 0.0
    %212 = vmatprep.subr.mxu0 0.0
    %213 = vmatpush1.msra.mxu0 0.0
    %214 = vmatprep.subr.mxu0 0.0
    %215 = vmatpush1.msra.mxu0 0.0
    %216 = vmatprep.subr.mxu0 0.0
    %217 = vmatpush1.msra.mxu0 0.0
    %218 = vmatprep.subr.mxu0 0.0
    %219 = vmatpush1.msra.mxu0 0.0
    %220 = vmatprep.subr.mxu0 0.0
    %221 = vmatpush1.msra.mxu0 0.0
    %222 = vmatprep.subr.mxu0 0.0
    %223 = vmatpush1.msra.mxu0 0.0
    %224 = vmatprep.subr.mxu0 0.0
    %225 = vmatpush1.msra.mxu0 0.0
    %226 = vmatprep.subr.mxu0 0.0
    %227 = vmatpush1.msra.mxu0 0.0
    %228 = vmatprep.subr.mxu0 0.0
    %229 = vmatpush1.msra.mxu0 0.0
    %230 = vmatprep.subr.mxu0 0.0
    %231 = vmatpush1.msra.mxu0 0.0
    %232 = vmatprep.subr.mxu0 0.0
    %233 = vmatpush1.msra.mxu0 0.0
    %234 = vmatprep.subr.mxu0 0.0
    %235 = vmatpush1.msra.mxu0 0.0
    %236 = vmatprep.subr.mxu0 0.0
    %237 = vmatpush1.msra.mxu0 0.0
    %238 = vmatprep.subr.mxu0 0.0
    %239 = vmatpush1.msra.mxu0 0.0
    %240 = vmatprep.subr.mxu0 0.0
    %241 = vmatpush1.msra.mxu0 0.0
    %242 = vmatprep.mubr.f32.mxu0 0.0
    %243 = vmatmul.mubr.f32.gmra.mrb[0].mxu0 %v105
    %v244 = vpop.f32.mrb[0].mxu0
    %v245 = vadd.f32 %v99, %v244
    %v246 = vpop.f32.mrb[0].mxu0
    %247 = vdwg.mxu0
    %v248 = vxor.u32 %v174, 2147483648
    %v249 = vmul.f32 %v248, 1.442695
    %v250 = vpow.pop %v249
    %v251 = vadd.f32 %v250, 1.0
    %v252 = vrcp.pop %v251
    %v253 = vmul.f32 1.0, %v252
    %v254 = vtanh.pop %v176
    %v255 = vxor.u32 %v245, 2147483648
    %v256 = vmul.f32 %v255, 1.442695
    %v257 = vpow.pop %v256
    %v258 = vadd.f32 %v257, 1.0
    %v259 = vrcp.pop %v258
    %v260 = vmul.f32 1.0, %v259
    %v261 = vmul.f32 %v253, %v254
    %v262 = vtanh.pop %v261
    %v263 = vmul.f32 %v260, %v262
    %v264 = vld [vmem:[#allocation6] sm:$0xff]
    %v265 = vld [vmem:[#allocation6 + $0x8] sm:$0xff]
    %v266 = vld [vmem:[#allocation6 + $0x10] sm:$0xff]
    %v267 = vld [vmem:[#allocation6 + $0x18] sm:$0xff]
    %v268 = vld [vmem:[#allocation6 + $0x20] sm:$0xff]
    %v269 = vld [vmem:[#allocation6 + $0x28] sm:$0xff]
    %v270 = vld [vmem:[#allocation6 + $0x30] sm:$0xff]
    %v271 = vld [vmem:[#allocation6 + $0x38] sm:$0xff]
    %v272 = vld [vmem:[#allocation6 + $0x40] sm:$0xff]
    %v273 = vld [vmem:[#allocation6 + $0x48] sm:$0xff]
    %v274 = vld [vmem:[#allocation6 + $0x50] sm:$0xff]
    %v275 = vld [vmem:[#allocation6 + $0x58] sm:$0xff]
    %v276 = vld [vmem:[#allocation6 + $0x60] sm:$0xff]
    %v277 = vld [vmem:[#allocation6 + $0x68] sm:$0xff]
    %v278 = vld [vmem:[#allocation6 + $0x70] sm:$0xff]
    %v279 = vld [vmem:[#allocation6 + $0x78] sm:$0xff]
    %v280 = vld [vmem:[#allocation6 + $0x80] sm:$0xff]
    %v281 = vld [vmem:[#allocation6 + $0x88] sm:$0xff]
    %v282 = vld [vmem:[#allocation6 + $0x90] sm:$0xff]
    %v283 = vld [vmem:[#allocation6 + $0x98] sm:$0xff]
    %v284 = vld [vmem:[#allocation6 + $0xa0] sm:$0xff]
    %v285 = vld [vmem:[#allocation6 + $0xa8] sm:$0xff]
    %v286 = vld [vmem:[#allocation6 + $0xb0] sm:$0xff]
    %v287 = vld [vmem:[#allocation6 + $0xb8] sm:$0xff]
    %v288 = vld [vmem:[#allocation6 + $0xc0] sm:$0xff]
    %v289 = vld [vmem:[#allocation6 + $0xc8] sm:$0xff]
    %v290 = vld [vmem:[#allocation6 + $0xd0] sm:$0xff]
    %v291 = vld [vmem:[#allocation6 + $0xd8] sm:$0xff]
    %v292 = vld [vmem:[#allocation6 + $0xe0] sm:$0xff]
    %v293 = vld [vmem:[#allocation6 + $0xe8] sm:$0xff]
    %v294 = vld [vmem:[#allocation6 + $0xf0] sm:$0xff]
    %v295 = vld [vmem:[#allocation6 + $0xf8] sm:$0xff]
    %v296 = vld [vmem:[#allocation6 + $0x100] sm:$0xff]
    %v297 = vld [vmem:[#allocation6 + $0x108] sm:$0xff]
    %v298 = vld [vmem:[#allocation6 + $0x110] sm:$0xff]
    %v299 = vld [vmem:[#allocation6 + $0x118] sm:$0xff]
    %v300 = vld [vmem:[#allocation6 + $0x120] sm:$0xff]
    %v301 = vld [vmem:[#allocation6 + $0x128] sm:$0xff]
    %v302 = vld [vmem:[#allocation6 + $0x130] sm:$0xff]
    %v303 = vld [vmem:[#allocation6 + $0x138] sm:$0xff]
    %v304 = vld [vmem:[#allocation6 + $0x140] sm:$0xff]
    %v305 = vld [vmem:[#allocation6 + $0x148] sm:$0xff]
    %v306 = vld [vmem:[#allocation6 + $0x150] sm:$0xff]
    %v307 = vld [vmem:[#allocation6 + $0x158] sm:$0xff]
    %v308 = vld [vmem:[#allocation6 + $0x160] sm:$0xff]
    %v309 = vld [vmem:[#allocation6 + $0x168] sm:$0xff]
    %v310 = vld [vmem:[#allocation6 + $0x170] sm:$0xff]
    %v311 = vld [vmem:[#allocation6 + $0x178] sm:$0xff]
    %v312 = vld [vmem:[%s4] sm:$0x7]
    %v314 = vlaneseq
    %v315 = vshrl.u32 %v314, 7
    %v316 = vsub.s32 0, %v315
    %v317 = vrot.slane %v312, %v316
    %v318 = vlaneseq
    %v319 = vshrl.u32 %v318, 7
    %v320 = vsub.s32 1, %v319
    %v321 = vrot.slane %v312, %v320
    %v322 = vlaneseq
    %v323 = vshrl.u32 %v322, 7
    %v324 = vsub.s32 2, %v323
    %v325 = vrot.slane %v312, %v324
    %329 = vmatprep.subr.mxu0 %v265
    %330 = vmatpush1.msra.mxu0 %v264
    %331 = vmatprep.subr.mxu0 %v268
    %332 = vmatpush1.msra.mxu0 %v267
    %333 = vmatprep.subr.mxu0 %v271
    %334 = vmatpush1.msra.mxu0 %v270
    %335 = vmatprep.subr.mxu0 %v274
    %336 = vmatpush1.msra.mxu0 %v273
    %337 = vmatprep.subr.mxu0 %v277
    %338 = vmatpush1.msra.mxu0 %v276
    %339 = vmatprep.subr.mxu0 %v280
    %340 = vmatpush1.msra.mxu0 %v279
    %341 = vmatprep.subr.mxu0 %v283
    %342 = vmatpush1.msra.mxu0 %v282
    %343 = vmatprep.subr.mxu0 %v286
    %344 = vmatpush1.msra.mxu0 %v285
    %345 = vmatprep.subr.mxu0 %v289
    %346 = vmatpush1.msra.mxu0 %v288
    %347 = vmatprep.subr.mxu0 %v292
    %348 = vmatpush1.msra.mxu0 %v291
    %349 = vmatprep.subr.mxu0 %v295
    %350 = vmatpush1.msra.mxu0 %v294
    %351 = vmatprep.subr.mxu0 %v298
    %352 = vmatpush1.msra.mxu0 %v297
    %353 = vmatprep.subr.mxu0 %v301
    %354 = vmatpush1.msra.mxu0 %v300
    %355 = vmatprep.subr.mxu0 %v304
    %356 = vmatpush1.msra.mxu0 %v303
    %357 = vmatprep.subr.mxu0 %v307
    %358 = vmatpush1.msra.mxu0 %v306
    %359 = vmatprep.subr.mxu0 %v310
    %360 = vmatpush1.msra.mxu0 %v309
    %361 = vmatprep.subr.mxu0 0.0
    %362 = vmatpush1.msra.mxu0 0.0
    %363 = vmatprep.subr.mxu0 0.0
    %364 = vmatpush1.msra.mxu0 0.0
    %365 = vmatprep.subr.mxu0 0.0
    %366 = vmatpush1.msra.mxu0 0.0
    %367 = vmatprep.subr.mxu0 0.0
    %368 = vmatpush1.msra.mxu0 0.0
    %369 = vmatprep.subr.mxu0 0.0
    %370 = vmatpush1.msra.mxu0 0.0
    %371 = vmatprep.subr.mxu0 0.0
    %372 = vmatpush1.msra.mxu0 0.0
    %373 = vmatprep.subr.mxu0 0.0
    %374 = vmatpush1.msra.mxu0 0.0
    %375 = vmatprep.subr.mxu0 0.0
    %376 = vmatpush1.msra.mxu0 0.0
    %377 = vmatprep.subr.mxu0 0.0
    %378 = vmatpush1.msra.mxu0 0.0
    %379 = vmatprep.subr.mxu0 0.0
    %380 = vmatpush1.msra.mxu0 0.0
    %381 = vmatprep.subr.mxu0 0.0
    %382 = vmatpush1.msra.mxu0 0.0
    %383 = vmatprep.subr.mxu0 0.0
    %384 = vmatpush1.msra.mxu0 0.0
    %385 = vmatprep.subr.mxu0 0.0
    %386 = vmatpush1.msra.mxu0 0.0
    %387 = vmatprep.subr.mxu0 0.0
    %388 = vmatpush1.msra.mxu0 0.0
    %389 = vmatprep.subr.mxu0 0.0
    %390 = vmatpush1.msra.mxu0 0.0
    %391 = vmatprep.subr.mxu0 0.0
    %392 = vmatpush1.msra.mxu0 0.0
    %393 = vmatprep.mubr.f32.mxu0 0.0
    %394 = vmatmul.mubr.f32.gmra.mrb[0].mxu0 %v263
    %v395 = vpop.f32.mrb[0].mxu0
    %v396 = vadd.f32 %v317, %v395
    %v397 = vpop.f32.mrb[0].mxu0
    %v398 = vadd.f32 %v321, %v397
    %399 = vdwg.mxu0
    %400 = vmatprep.subr.mxu0 0.0
    %401 = vmatpush1.msra.mxu0 %v266
    %402 = vmatprep.subr.mxu0 0.0
    %403 = vmatpush1.msra.mxu0 %v269
    %404 = vmatprep.subr.mxu0 0.0
    %405 = vmatpush1.msra.mxu0 %v272
    %406 = vmatprep.subr.mxu0 0.0
    %407 = vmatpush1.msra.mxu0 %v275
    %408 = vmatprep.subr.mxu0 0.0
    %409 = vmatpush1.msra.mxu0 %v278
    %410 = vmatprep.subr.mxu0 0.0
    %411 = vmatpush1.msra.mxu0 %v281
    %412 = vmatprep.subr.mxu0 0.0
    %413 = vmatpush1.msra.mxu0 %v284
    %414 = vmatprep.subr.mxu0 0.0
    %415 = vmatpush1.msra.mxu0 %v287
    %416 = vmatprep.subr.mxu0 0.0
    %417 = vmatpush1.msra.mxu0 %v290
    %418 = vmatprep.subr.mxu0 0.0
    %419 = vmatpush1.msra.mxu0 %v293
    %420 = vmatprep.subr.mxu0 0.0
    %421 = vmatpush1.msra.mxu0 %v296
    %422 = vmatprep.subr.mxu0 0.0
    %423 = vmatpush1.msra.mxu0 %v299
    %424 = vmatprep.subr.mxu0 0.0
    %425 = vmatpush1.msra.mxu0 %v302
    %426 = vmatprep.subr.mxu0 0.0
    %427 = vmatpush1.msra.mxu0 %v305
    %428 = vmatprep.subr.mxu0 0.0
    %429 = vmatpush1.msra.mxu0 %v308
    %430 = vmatprep.subr.mxu0 0.0
    %431 = vmatpush1.msra.mxu0 %v311
    %432 = vmatprep.subr.mxu0 0.0
    %433 = vmatpush1.msra.mxu0 0.0
    %434 = vmatprep.subr.mxu0 0.0
    %435 = vmatpush1.msra.mxu0 0.0
    %436 = vmatprep.subr.mxu0 0.0
    %437 = vmatpush1.msra.mxu0 0.0
    %438 = vmatprep.subr.mxu0 0.0
    %439 = vmatpush1.msra.mxu0 0.0
    %440 = vmatprep.subr.mxu0 0.0
    %441 = vmatpush1.msra.mxu0 0.0
    %442 = vmatprep.subr.mxu0 0.0
    %443 = vmatpush1.msra.mxu0 0.0
    %444 = vmatprep.subr.mxu0 0.0
    %445 = vmatpush1.msra.mxu0 0.0
    %446 = vmatprep.subr.mxu0 0.0
    %447 = vmatpush1.msra.mxu0 0.0
    %448 = vmatprep.subr.mxu0 0.0
    %449 = vmatpush1.msra.mxu0 0.0
    %450 = vmatprep.subr.mxu0 0.0
    %451 = vmatpush1.msra.mxu0 0.0
    %452 = vmatprep.subr.mxu0 0.0
    %453 = vmatpush1.msra.mxu0 0.0
    %454 = vmatprep.subr.mxu0 0.0
    %455 = vmatpush1.msra.mxu0 0.0
    %456 = vmatprep.subr.mxu0 0.0
    %457 = vmatpush1.msra.mxu0 0.0
    %458 = vmatprep.subr.mxu0 0.0
    %459 = vmatpush1.msra.mxu0 0.0
    %460 = vmatprep.subr.mxu0 0.0
    %461 = vmatpush1.msra.mxu0 0.0
    %462 = vmatprep.subr.mxu0 0.0
    %463 = vmatpush1.msra.mxu0 0.0
    %464 = vmatprep.mubr.f32.mxu0 0.0
    %465 = vmatmul.mubr.f32.gmra.mrb[0].mxu0 %v263
    %v466 = vpop.f32.mrb[0].mxu0
    %v467 = vadd.f32 %v325, %v466
    %v468 = vpop.f32.mrb[0].mxu0
    %469 = vdwg.mxu0
    %v470 = vxor.u32 %v396, 2147483648
    %v471 = vmul.f32 %v470, 1.442695
    %v472 = vpow.pop %v471
    %v473 = vadd.f32 %v472, 1.0
    %v474 = vrcp.pop %v473
    %v475 = vmul.f32 1.0, %v474
    %v476 = vtanh.pop %v398
    %v477 = vxor.u32 %v467, 2147483648
    %v478 = vmul.f32 %v477, 1.442695
    %v479 = vpow.pop %v478
    %v480 = vadd.f32 %v479, 1.0
    %v481 = vrcp.pop %v480
    %v482 = vmul.f32 1.0, %v481
    %v483 = vmul.f32 %v475, %v476
    %v484 = vtanh.pop %v483
    %v485 = vmul.f32 %v482, %v484
    %v486 = vld [vmem:[#allocation7] sm:$0xff]
    %v487 = vld [vmem:[#allocation7 + $0x8] sm:$0xff]
    %v488 = vld [vmem:[#allocation7 + $0x10] sm:$0xff]
    %v489 = vld [vmem:[#allocation7 + $0x18] sm:$0xff]
    %v490 = vld [vmem:[#allocation7 + $0x20] sm:$0xff]
    %v491 = vld [vmem:[#allocation7 + $0x28] sm:$0xff]
    %v492 = vld [vmem:[#allocation7 + $0x30] sm:$0xff]
    %v493 = vld [vmem:[#allocation7 + $0x38] sm:$0xff]
    %v494 = vld [vmem:[#allocation7 + $0x40] sm:$0xff]
    %v495 = vld [vmem:[#allocation7 + $0x48] sm:$0xff]
    %v496 = vld [vmem:[#allocation7 + $0x50] sm:$0xff]
    %v497 = vld [vmem:[#allocation7 + $0x58] sm:$0xff]
    %v498 = vld [vmem:[#allocation7 + $0x60] sm:$0xff]
    %v499 = vld [vmem:[#allocation7 + $0x68] sm:$0xff]
    %v500 = vld [vmem:[#allocation7 + $0x70] sm:$0xff]
    %v501 = vld [vmem:[#allocation7 + $0x78] sm:$0xff]
    %v502 = vld [vmem:[%s6] sm:$0x1]
    %v504 = vlaneseq
    %v505 = vshrl.u32 %v504, 7
    %v506 = vsub.s32 0, %v505
    %v507 = vrot.slane %v502, %v506
    %509 = vmatprep.subr.mxu0 0.0
    %510 = vmatpush1.msra.mxu0 %v486
    %511 = vmatprep.subr.mxu0 0.0
    %512 = vmatpush1.msra.mxu0 %v487
    %513 = vmatprep.subr.mxu0 0.0
    %514 = vmatpush1.msra.mxu0 %v488
    %515 = vmatprep.subr.mxu0 0.0
    %516 = vmatpush1.msra.mxu0 %v489
    %517 = vmatprep.subr.mxu0 0.0
    %518 = vmatpush1.msra.mxu0 %v490
    %519 = vmatprep.subr.mxu0 0.0
    %520 = vmatpush1.msra.mxu0 %v491
    %521 = vmatprep.subr.mxu0 0.0
    %522 = vmatpush1.msra.mxu0 %v492
    %523 = vmatprep.subr.mxu0 0.0
    %524 = vmatpush1.msra.mxu0 %v493
    %525 = vmatprep.subr.mxu0 0.0
    %526 = vmatpush1.msra.mxu0 %v494
    %527 = vmatprep.subr.mxu0 0.0
    %528 = vmatpush1.msra.mxu0 %v495
    %529 = vmatprep.subr.mxu0 0.0
    %530 = vmatpush1.msra.mxu0 %v496
    %531 = vmatprep.subr.mxu0 0.0
    %532 = vmatpush1.msra.mxu0 %v497
    %533 = vmatprep.subr.mxu0 0.0
    %534 = vmatpush1.msra.mxu0 %v498
    %535 = vmatprep.subr.mxu0 0.0
    %536 = vmatpush1.msra.mxu0 %v499
    %537 = vmatprep.subr.mxu0 0.0
    %538 = vmatpush1.msra.mxu0 %v500
    %539 = vmatprep.subr.mxu0 0.0
    %540 = vmatpush1.msra.mxu0 %v501
    %541 = vmatprep.subr.mxu0 0.0
    %542 = vmatpush1.msra.mxu0 0.0
    %543 = vmatprep.subr.mxu0 0.0
    %544 = vmatpush1.msra.mxu0 0.0
    %545 = vmatprep.subr.mxu0 0.0
    %546 = vmatpush1.msra.mxu0 0.0
    %547 = vmatprep.subr.mxu0 0.0
    %548 = vmatpush1.msra.mxu0 0.0
    %549 = vmatprep.subr.mxu0 0.0
    %550 = vmatpush1.msra.mxu0 0.0
    %551 = vmatprep.subr.mxu0 0.0
    %552 = vmatpush1.msra.mxu0 0.0
    %553 = vmatprep.subr.mxu0 0.0
    %554 = vmatpush1.msra.mxu0 0.0
    %555 = vmatprep.subr.mxu0 0.0
    %556 = vmatpush1.msra.mxu0 0.0
    %557 = vmatprep.subr.mxu0 0.0
    %558 = vmatpush1.msra.mxu0 0.0
    %559 = vmatprep.subr.mxu0 0.0
    %560 = vmatpush1.msra.mxu0 0.0
    %561 = vmatprep.subr.mxu0 0.0
    %562 = vmatpush1.msra.mxu0 0.0
    %563 = vmatprep.subr.mxu0 0.0
    %564 = vmatpush1.msra.mxu0 0.0
    %565 = vmatprep.subr.mxu0 0.0
    %566 = vmatpush1.msra.mxu0 0.0
    %567 = vmatprep.subr.mxu0 0.0
    %568 = vmatpush1.msra.mxu0 0.0
    %569 = vmatprep.subr.mxu0 0.0
    %570 = vmatpush1.msra.mxu0 0.0
    %571 = vmatprep.subr.mxu0 0.0
    %572 = vmatpush1.msra.mxu0 0.0
    %573 = vmatprep.mubr.f32.mxu0 0.0
    %574 = vmatmul.mubr.f32.gmra.mrb[0].mxu0 %v485
    %v575 = vpop.f32.mrb[0].mxu0
    %v576 = vadd.f32 %v507, %v575
    %v577 = vpop.f32.mrb[0].mxu0
    %578 = vdwg.mxu0
    %v579 = vxor.u32 %v576, 2147483648
    %v580 = vmul.f32 %v579, 1.442695
    %v581 = vpow.pop %v580
    %v582 = vadd.f32 %v581, 1.0
    %v583 = vrcp.pop %v582
    %v584 = vmul.f32 1.0, %v583
    %585 = vst [vmem:[%s7] sm:$0xff] %v584
    // Predicated region
    $region46: #{lstm_model_forward.1} parent=1 // pred_check
      _
    $region47: #{lstm_model_forward.1} parent=1 // pred_check_branch
      %587 = sbr.rel (0) target = $region49
    $region48: #{lstm_model_forward.1} parent=1 // pred_region
      _
    $region49: #{lstm_model_forward.1} parent=1 // pred_fallthru
      _
    // Predicated region
    $region50: #{lstm_model_forward.1} parent=1 // pred_check
      _
    $region51: #{lstm_model_forward.1} parent=1 // pred_check_branch
      %589 = sbr.rel (0) target = $region53
    $region52: #{lstm_model_forward.1} parent=1 // pred_region
      _
    $region53: #{lstm_model_forward.1} parent=1 // pred_fallthru
      _
    %590 = vsyncpa [#allocation3], 1
    %591 = vsyncpa [#allocation5], 1
    %592 = vsyncpa [#allocation8], 1

</llo_original>
